<compile_context>
chip_gen: v7x
topology: tpu7x:2x2x1
jax: 0.10.0
libtpu: 0.0.40
codegen_flags: <defaults>
</compile_context>

<pallas_src>
import jax
import jax.numpy as jnp
from jax import lax
from jax.experimental import pallas as pl
from jax.experimental.pallas import tpu as pltpu

_VMEM = pl.BlockSpec(memory_space=pltpu.MemorySpace.VMEM)


# ------------------------------ fused kernel --------------------------------

def _fused_resgcn_predict_kernel(src_ref, dst_ref, x_ref, a_ref,
                                 w1_ref, b1_ref, w2_ref, b2_ref,
                                 wf_ref, bf_ref, o_ref):
    x = x_ref[...]            # (N, C)  f32 node features
    a = a_ref[...]            # (N, N)  bf16 normalized adjacency

    def gcn_block(h, w_ref, b_ref):
        # ResGCNBlock: relu(GCNConv(h)) -> dropout(id) -> F.normalize -> (.+h)/2
        hw = jnp.dot(h.astype(jnp.bfloat16), w_ref[...],
                     preferred_element_type=jnp.float32)
        g = jnp.dot(a, hw.astype(jnp.bfloat16),
                    preferred_element_type=jnp.float32) + b_ref[...]
        g = jnp.maximum(g, 0.0)                             # ReLU
        # TODO(synk): F.dropout reproduced as identity (inference semantics).
        inv = lax.rsqrt(jnp.sum(g * g, axis=1, keepdims=True) + 1e-24)
        g = g * inv                                         # F.normalize(dim=1)
        return (g + h) * 0.5                                # residual skip

    h = gcn_block(x, w1_ref, b1_ref)                        # ResGCNBlock 1
    h = gcn_block(h, w2_ref, b2_ref)                        # ResGCNBlock 2

    # final GCNConv + log_softmax(dim=1)
    hw = jnp.dot(h.astype(jnp.bfloat16), wf_ref[...],
                 preferred_element_type=jnp.float32)
    z = jnp.dot(a, hw.astype(jnp.bfloat16),
                preferred_element_type=jnp.float32) + bf_ref[...]
    z = z - jnp.max(z, axis=1, keepdims=True)
    logp = z - jnp.log(jnp.sum(jnp.exp(z), axis=1, keepdims=True))   # (N, OUT)

    # DotProductPredictor: out[e] = h[src_e] * h[dst_e] * [-1, -1]
    # (elementwise, NO feature-dim sum — matches the reference module exactly).
    # In-kernel gather: one-hot selection matrices from iota-compare, then two
    # tiny MXU matmuls on the VMEM-resident logp.
    e = o_ref.shape[0]
    n = logp.shape[0]
    lanes = lax.broadcasted_iota(jnp.int32, (e, n), 1)
    sel_s = (lanes == src_ref[...]).astype(jnp.float32)     # (E, N)
    sel_d = (lanes == dst_ref[...]).astype(jnp.float32)
    hs = jnp.dot(sel_s, logp, preferred_element_type=jnp.float32)
    hd = jnp.dot(sel_d, logp, preferred_element_type=jnp.float32)
    o_ref[...] = -(hs * hd)


# -------------------------------- wrapper ------------------------------------

def resgcn_predict(x, a_hat_bf16, params, pred_src, pred_dst):
    e = pred_src.shape[0]
    out_c = params["wf"].shape[1]
    return pl.pallas_call(
        _fused_resgcn_predict_kernel,
        out_shape=jax.ShapeDtypeStruct((e, out_c), jnp.float32),
        in_specs=[_VMEM] * 10,
        out_specs=_VMEM,
    )(pred_src.reshape(e, 1).astype(jnp.int32),
      pred_dst.reshape(e, 1).astype(jnp.int32),
      x, a_hat_bf16,
      params["w1"], params["b1"],
      params["w2"], params["b2"],
      params["wf"], params["bf"])


resgcn_predict_jit = jax.jit(resgcn_predict)


# ---------------------------- one-time glue/setup -----------------------------

def gcn_norm_dense(edge_index, edge_weight, num_nodes):
    """Dense D^-1/2 (A + I) D^-1/2 matching torch_geometric gcn_norm
    (self-loops weight 1; aggregation source -> target).  Built ONCE."""
    src, dst = edge_index[0], edge_index[1]
    a = jnp.zeros((num_nodes, num_nodes), jnp.float32)
    a = a.at[dst, src].add(edge_weight.astype(jnp.float32))
    a = a + jnp.eye(num_nodes, dtype=jnp.float32)
    deg = jnp.sum(a, axis=1)
    dinv = jnp.where(deg > 0, 1.0 / jnp.sqrt(deg), 0.0)
    return dinv[:, None] * a * dinv[None, :]


def glorot(key, shape):
    fan_in, fan_out = shape
    lim = jnp.sqrt(6.0 / (fan_in + fan_out))
    return jax.random.uniform(key, shape, jnp.float32, -lim, lim)


# --------------------------------- main ---------------------------------------

if __name__ == "__main__":
    key = jax.random.PRNGKey(0)
    N, C, OUT = 16, 32, 2          # out_channels = 2 (matches the [-1,-1] factor)
    E_GRAPH, E_PRED = 40, 24

    keys = jax.random.split(key, 10)
    x = jax.random.normal(keys[0], (N, C), jnp.float32)

    # synthetic deterministic graph (replaces the file-based AS edge lists)
    src = jax.random.randint(keys[1], (E_GRAPH,), 0, N)
    dst = jax.random.randint(keys[2], (E_GRAPH,), 0, N)
    edge_index = jnp.stack([src, dst])
    edge_weight = jax.random.uniform(keys[3], (E_GRAPH,), jnp.float32, 0.1, 1.0)

    # synthetic deterministic predictor edge list (replaces line_graph_edge.txt)
    pred_src = jax.random.randint(keys[4], (E_PRED,), 0, N)
    pred_dst = jax.random.randint(keys[5], (E_PRED,), 0, N)

    # --- hoisted one-time setup (graph + params are static across forwards) ---
    a_hat_bf16 = gcn_norm_dense(edge_index, edge_weight, N).astype(jnp.bfloat16)
    params = {
        "w1": glorot(keys[6], (C, C)).astype(jnp.bfloat16),
        "b1": jnp.zeros((1, C), jnp.float32),
        "w2": glorot(keys[7], (C, C)).astype(jnp.bfloat16),
        "b2": jnp.zeros((1, C), jnp.float32),
        "wf": glorot(keys[8], (C, OUT)).astype(jnp.bfloat16),
        "bf": jnp.zeros((1, OUT), jnp.float32),
    }

    out = resgcn_predict_jit(x, a_hat_bf16, params, pred_src, pred_dst)
    out = jax.block_until_ready(out)
    assert out.shape == (E_PRED, OUT)
    assert bool(jnp.all(jnp.isfinite(out)))
    print("KERNEL_OK")
</pallas_src>

<mosaic_0001>
module attributes {stable_mosaic.version = 11 : i64} {
  func.func @_fused_resgcn_predict_kernel(%arg0: memref<24x1xi32, #tpu.memory_space<vmem>>, %arg1: memref<24x1xi32, #tpu.memory_space<vmem>>, %arg2: memref<16x32xf32, #tpu.memory_space<vmem>>, %arg3: memref<16x16xbf16, #tpu.memory_space<vmem>>, %arg4: memref<32x32xbf16, #tpu.memory_space<vmem>>, %arg5: memref<1x32xf32, #tpu.memory_space<vmem>>, %arg6: memref<32x32xbf16, #tpu.memory_space<vmem>>, %arg7: memref<1x32xf32, #tpu.memory_space<vmem>>, %arg8: memref<32x2xbf16, #tpu.memory_space<vmem>>, %arg9: memref<1x2xf32, #tpu.memory_space<vmem>>, %arg10: memref<24x2xf32, #tpu.memory_space<vmem>>) attributes {dimension_semantics = [], scalar_prefetch = 0 : i64, scratch_operands = 0 : i64, tpu.core_type = #tpu.core_type<tc>} {
    %c0 = arith.constant 0 : index
    %c0_0 = arith.constant 0 : index
    %0 = vector.load %arg2[%c0, %c0_0] : memref<16x32xf32, #tpu.memory_space<vmem>>, vector<16x32xf32>
    %c0_1 = arith.constant 0 : index
    %c0_2 = arith.constant 0 : index
    %1 = vector.load %arg3[%c0_1, %c0_2] : memref<16x16xbf16, #tpu.memory_space<vmem>>, vector<16x16xbf16>
    %2 = arith.truncf %0 : vector<16x32xf32> to vector<16x32xbf16>
    %c0_3 = arith.constant 0 : index
    %c0_4 = arith.constant 0 : index
    %3 = vector.load %arg4[%c0_3, %c0_4] : memref<32x32xbf16, #tpu.memory_space<vmem>>, vector<32x32xbf16>
    %cst = arith.constant dense<0.000000e+00> : vector<16x32xf32>
    %4 = tpu.matmul %2, %3, %cst {dimension_numbers = #tpu.dot_dimension_numbers<[1], [0], [0], [1], [0, 0, 1, 1], [], []>} : vector<16x32xbf16>, vector<32x32xbf16>, vector<16x32xf32> -> vector<16x32xf32>
    %5 = arith.truncf %4 : vector<16x32xf32> to vector<16x32xbf16>
    %cst_5 = arith.constant dense<0.000000e+00> : vector<16x32xf32>
    %6 = tpu.matmul %1, %5, %cst_5 {dimension_numbers = #tpu.dot_dimension_numbers<[1], [0], [0], [1], [0, 0, 1, 1], [], []>} : vector<16x16xbf16>, vector<16x32xbf16>, vector<16x32xf32> -> vector<16x32xf32>
    %c0_6 = arith.constant 0 : index
    %c0_7 = arith.constant 0 : index
    %7 = vector.load %arg5[%c0_6, %c0_7] : memref<1x32xf32, #tpu.memory_space<vmem>>, vector<1x32xf32>
    %8 = vector.broadcast %7 : vector<1x32xf32> to vector<16x32xf32>
    %9 = arith.addf %6, %8 : vector<16x32xf32>
    %cst_8 = arith.constant 0.000000e+00 : f32
    %10 = vector.broadcast %cst_8 : f32 to vector<16x32xf32>
    %11 = arith.maximumf %9, %10 : vector<16x32xf32>
    %12 = arith.mulf %11, %11 : vector<16x32xf32>
    %cst_9 = arith.constant dense<0.000000e+00> : vector<16xf32>
    %13 = vector.multi_reduction <add>, %12, %cst_9 [1] : vector<16x32xf32> to vector<16xf32>
    %14 = vector.shape_cast %13 : vector<16xf32> to vector<16x1xf32>
    %cst_10 = arith.constant 1.000000e-24 : f32
    %15 = vector.broadcast %cst_10 : f32 to vector<16x1xf32>
    %16 = arith.addf %14, %15 : vector<16x1xf32>
    %17 = math.rsqrt %16 : vector<16x1xf32>
    %18 = vector.broadcast %17 : vector<16x1xf32> to vector<16x32xf32>
    %19 = arith.mulf %11, %18 : vector<16x32xf32>
    %20 = arith.addf %19, %0 : vector<16x32xf32>
    %cst_11 = arith.constant 5.000000e-01 : f32
    %21 = vector.broadcast %cst_11 : f32 to vector<16x32xf32>
    %22 = arith.mulf %20, %21 : vector<16x32xf32>
    %23 = arith.truncf %22 : vector<16x32xf32> to vector<16x32xbf16>
    %c0_12 = arith.constant 0 : index
    %c0_13 = arith.constant 0 : index
    %24 = vector.load %arg6[%c0_12, %c0_13] : memref<32x32xbf16, #tpu.memory_space<vmem>>, vector<32x32xbf16>
    %cst_14 = arith.constant dense<0.000000e+00> : vector<16x32xf32>
    %25 = tpu.matmul %23, %24, %cst_14 {dimension_numbers = #tpu.dot_dimension_numbers<[1], [0], [0], [1], [0, 0, 1, 1], [], []>} : vector<16x32xbf16>, vector<32x32xbf16>, vector<16x32xf32> -> vector<16x32xf32>
    %26 = arith.truncf %25 : vector<16x32xf32> to vector<16x32xbf16>
    %cst_15 = arith.constant dense<0.000000e+00> : vector<16x32xf32>
    %27 = tpu.matmul %1, %26, %cst_15 {dimension_numbers = #tpu.dot_dimension_numbers<[1], [0], [0], [1], [0, 0, 1, 1], [], []>} : vector<16x16xbf16>, vector<16x32xbf16>, vector<16x32xf32> -> vector<16x32xf32>
    %c0_16 = arith.constant 0 : index
    %c0_17 = arith.constant 0 : index
    %28 = vector.load %arg7[%c0_16, %c0_17] : memref<1x32xf32, #tpu.memory_space<vmem>>, vector<1x32xf32>
    %29 = vector.broadcast %28 : vector<1x32xf32> to vector<16x32xf32>
    %30 = arith.addf %27, %29 : vector<16x32xf32>
    %cst_18 = arith.constant 0.000000e+00 : f32
    %31 = vector.broadcast %cst_18 : f32 to vector<16x32xf32>
    %32 = arith.maximumf %30, %31 : vector<16x32xf32>
    %33 = arith.mulf %32, %32 : vector<16x32xf32>
    %cst_19 = arith.constant dense<0.000000e+00> : vector<16xf32>
    %34 = vector.multi_reduction <add>, %33, %cst_19 [1] : vector<16x32xf32> to vector<16xf32>
    %35 = vector.shape_cast %34 : vector<16xf32> to vector<16x1xf32>
    %cst_20 = arith.constant 1.000000e-24 : f32
    %36 = vector.broadcast %cst_20 : f32 to vector<16x1xf32>
    %37 = arith.addf %35, %36 : vector<16x1xf32>
    %38 = math.rsqrt %37 : vector<16x1xf32>
    %39 = vector.broadcast %38 : vector<16x1xf32> to vector<16x32xf32>
    %40 = arith.mulf %32, %39 : vector<16x32xf32>
    %41 = arith.addf %40, %22 : vector<16x32xf32>
    %cst_21 = arith.constant 5.000000e-01 : f32
    %42 = vector.broadcast %cst_21 : f32 to vector<16x32xf32>
    %43 = arith.mulf %41, %42 : vector<16x32xf32>
    %44 = arith.truncf %43 : vector<16x32xf32> to vector<16x32xbf16>
    %c0_22 = arith.constant 0 : index
    %c0_23 = arith.constant 0 : index
    %45 = vector.load %arg8[%c0_22, %c0_23] : memref<32x2xbf16, #tpu.memory_space<vmem>>, vector<32x2xbf16>
    %cst_24 = arith.constant dense<0.000000e+00> : vector<16x2xf32>
    %46 = tpu.matmul %44, %45, %cst_24 {dimension_numbers = #tpu.dot_dimension_numbers<[1], [0], [0], [1], [0, 0, 1, 1], [], []>} : vector<16x32xbf16>, vector<32x2xbf16>, vector<16x2xf32> -> vector<16x2xf32>
    %47 = arith.truncf %46 : vector<16x2xf32> to vector<16x2xbf16>
    %cst_25 = arith.constant dense<0.000000e+00> : vector<16x2xf32>
    %48 = tpu.matmul %1, %47, %cst_25 {dimension_numbers = #tpu.dot_dimension_numbers<[1], [0], [0], [1], [0, 0, 1, 1], [], []>} : vector<16x16xbf16>, vector<16x2xbf16>, vector<16x2xf32> -> vector<16x2xf32>
    %c0_26 = arith.constant 0 : index
    %c0_27 = arith.constant 0 : index
    %49 = vector.load %arg9[%c0_26, %c0_27] : memref<1x2xf32, #tpu.memory_space<vmem>>, vector<1x2xf32>
    %50 = vector.broadcast %49 : vector<1x2xf32> to vector<16x2xf32>
    %51 = arith.addf %48, %50 : vector<16x2xf32>
    %cst_28 = arith.constant dense<0xFF800000> : vector<16xf32>
    %52 = vector.multi_reduction <maximumf>, %51, %cst_28 [1] : vector<16x2xf32> to vector<16xf32>
    %53 = vector.shape_cast %52 : vector<16xf32> to vector<16x1xf32>
    %54 = vector.broadcast %53 : vector<16x1xf32> to vector<16x2xf32>
    %55 = arith.subf %51, %54 : vector<16x2xf32>
    %56 = math.exp %55 : vector<16x2xf32>
    %cst_29 = arith.constant dense<0.000000e+00> : vector<16xf32>
    %57 = vector.multi_reduction <add>, %56, %cst_29 [1] : vector<16x2xf32> to vector<16xf32>
    %58 = vector.shape_cast %57 : vector<16xf32> to vector<16x1xf32>
    %59 = math.log %58 : vector<16x1xf32>
    %60 = vector.broadcast %59 : vector<16x1xf32> to vector<16x2xf32>
    %61 = arith.subf %55, %60 : vector<16x2xf32>
    %62 = tpu.iota {dimensions = array<i32: 1>} : vector<24x16xi32>
    %c0_30 = arith.constant 0 : index
    %c0_31 = arith.constant 0 : index
    %63 = vector.load %arg0[%c0_30, %c0_31] : memref<24x1xi32, #tpu.memory_space<vmem>>, vector<24x1xi32>
    %64 = vector.broadcast %63 : vector<24x1xi32> to vector<24x16xi32>
    %65 = arith.cmpi eq, %62, %64 : vector<24x16xi32>
    %66 = arith.extui %65 : vector<24x16xi1> to vector<24x16xi32>
    %67 = arith.sitofp %66 : vector<24x16xi32> to vector<24x16xf32>
    %c0_32 = arith.constant 0 : index
    %c0_33 = arith.constant 0 : index
    %68 = vector.load %arg1[%c0_32, %c0_33] : memref<24x1xi32, #tpu.memory_space<vmem>>, vector<24x1xi32>
    %69 = vector.broadcast %68 : vector<24x1xi32> to vector<24x16xi32>
    %70 = arith.cmpi eq, %62, %69 : vector<24x16xi32>
    %71 = arith.extui %70 : vector<24x16xi1> to vector<24x16xi32>
    %72 = arith.sitofp %71 : vector<24x16xi32> to vector<24x16xf32>
    %cst_34 = arith.constant dense<0.000000e+00> : vector<24x2xf32>
    %73 = tpu.matmul %67, %61, %cst_34 {dimension_numbers = #tpu.dot_dimension_numbers<[1], [0], [0], [1], [0, 0, 1, 1], [], []>} : vector<24x16xf32>, vector<16x2xf32>, vector<24x2xf32> -> vector<24x2xf32>
    %cst_35 = arith.constant dense<0.000000e+00> : vector<24x2xf32>
    %74 = tpu.matmul %72, %61, %cst_35 {dimension_numbers = #tpu.dot_dimension_numbers<[1], [0], [0], [1], [0, 0, 1, 1], [], []>} : vector<24x16xf32>, vector<16x2xf32>, vector<24x2xf32> -> vector<24x2xf32>
    %75 = arith.mulf %73, %74 : vector<24x2xf32>
    %cst_36 = arith.constant 0.000000e+00 : f32
    %76 = vector.broadcast %cst_36 : f32 to vector<24x2xf32>
    %77 = arith.subf %76, %75 : vector<24x2xf32>
    %c0_37 = arith.constant 0 : index
    %c0_38 = arith.constant 0 : index
    %78 = vector.load %arg10[%c0_37, %c0_38] : memref<24x2xf32, #tpu.memory_space<vmem>>, vector<24x2xf32>
    tpu.vector_store %arg10[%c0_37, %c0_38], %77 {strides = array<i32>} : memref<24x2xf32, #tpu.memory_space<vmem>>, vector<24x2xf32>,
    return
  }
}

</mosaic_0001>

<llo_original>
// kernel: resgcn_predict.1
$region0: #{resgcn_predict.1}
  #allocation0 [shape = 'u32[]', space=smem, size = 0x4, offset = 0x4, fixed_abs, tag = 'smem constant byte address 0x4 - core index']
  #allocation1 [shape = 'u32[144,128]{1,0:T(1,128)}', space=vmem, size = 0x12000, scoped, tag = 'internal scratch']
  %s0 = inlined_call_operand.vmem [shape: s32[24,1], index: 0, kind: input, shape index: {}]
  %s1 = inlined_call_operand.vmem [shape: s32[24,1], index: 1, kind: input, shape index: {}]
  %s2 = inlined_call_operand.vmem [shape: f32[16,32], index: 2, kind: input, shape index: {}]
  %s3 = inlined_call_operand.vmem [shape: bf16[16,16], index: 3, kind: input, shape index: {}]
  %s4 = inlined_call_operand.vmem [shape: bf16[32,32], index: 4, kind: input, shape index: {}]
  %s5 = inlined_call_operand.vmem [shape: f32[1,32], index: 5, kind: input, shape index: {}]
  %s6 = inlined_call_operand.vmem [shape: bf16[32,32], index: 6, kind: input, shape index: {}]
  %s7 = inlined_call_operand.vmem [shape: f32[1,32], index: 7, kind: input, shape index: {}]
  %s8 = inlined_call_operand.vmem [shape: bf16[32,2], index: 8, kind: input, shape index: {}]
  %s9 = inlined_call_operand.vmem [shape: f32[1,2], index: 9, kind: input, shape index: {}]
  %s10 = inlined_call_operand.vmem [shape: f32[24,2], index: 10, kind: output, shape index: {}]
  %s11 = sld [smem:[#allocation0]]
  $region50: #{resgcn_predict.1} parent=0
    _
  %s13 = ssub.s32 1, %s11
  %s14 = scalar_select 0, %s13, %s11
  // Predicated region
  $region2: #{resgcn_predict.1} parent=0 // pred_check
    _
  $region3: #{resgcn_predict.1} parent=0 // pred_check_branch
    %16 = sbr.rel (0) target = $region5
  $region4: #{resgcn_predict.1} parent=0 // pred_region
    _
  $region5: #{resgcn_predict.1} parent=0 // pred_fallthru
    _
  // Predicated region
  $region6: #{resgcn_predict.1} parent=0 // pred_check
    _
  $region7: #{resgcn_predict.1} parent=0 // pred_check_branch
    %18 = sbr.rel (0) target = $region9
  $region8: #{resgcn_predict.1} parent=0 // pred_region
    _
  $region9: #{resgcn_predict.1} parent=0 // pred_fallthru
    _
  // Predicated region
  $region10: #{resgcn_predict.1} parent=0 // pred_check
    _
  $region11: #{resgcn_predict.1} parent=0 // pred_check_branch
    %20 = sbr.rel (0) target = $region13
  $region12: #{resgcn_predict.1} parent=0 // pred_region
    _
  $region13: #{resgcn_predict.1} parent=0 // pred_fallthru
    _
  // Predicated region
  $region14: #{resgcn_predict.1} parent=0 // pred_check
    _
  $region15: #{resgcn_predict.1} parent=0 // pred_check_branch
    %22 = sbr.rel (0) target = $region17
  $region16: #{resgcn_predict.1} parent=0 // pred_region
    _
  $region17: #{resgcn_predict.1} parent=0 // pred_fallthru
    _
  // Predicated region
  $region18: #{resgcn_predict.1} parent=0 // pred_check
    _
  $region19: #{resgcn_predict.1} parent=0 // pred_check_branch
    %24 = sbr.rel (0) target = $region21
  $region20: #{resgcn_predict.1} parent=0 // pred_region
    _
  $region21: #{resgcn_predict.1} parent=0 // pred_fallthru
    _
  // Predicated region
  $region22: #{resgcn_predict.1} parent=0 // pred_check
    _
  $region23: #{resgcn_predict.1} parent=0 // pred_check_branch
    %26 = sbr.rel (0) target = $region25
  $region24: #{resgcn_predict.1} parent=0 // pred_region
    _
  $region25: #{resgcn_predict.1} parent=0 // pred_fallthru
    _
  // Predicated region
  $region26: #{resgcn_predict.1} parent=0 // pred_check
    _
  $region27: #{resgcn_predict.1} parent=0 // pred_check_branch
    %28 = sbr.rel (0) target = $region29
  $region28: #{resgcn_predict.1} parent=0 // pred_region
    _
  $region29: #{resgcn_predict.1} parent=0 // pred_fallthru
    _
  // Predicated region
  $region30: #{resgcn_predict.1} parent=0 // pred_check
    _
  $region31: #{resgcn_predict.1} parent=0 // pred_check_branch
    %30 = sbr.rel (0) target = $region33
  $region32: #{resgcn_predict.1} parent=0 // pred_region
    _
  $region33: #{resgcn_predict.1} parent=0 // pred_fallthru
    _
  // Predicated region
  $region34: #{resgcn_predict.1} parent=0 // pred_check
    _
  $region35: #{resgcn_predict.1} parent=0 // pred_check_branch
    %32 = sbr.rel (0) target = $region37
  $region36: #{resgcn_predict.1} parent=0 // pred_region
    _
  $region37: #{resgcn_predict.1} parent=0 // pred_fallthru
    _
  // Predicated region
  $region38: #{resgcn_predict.1} parent=0 // pred_check
    _
  $region39: #{resgcn_predict.1} parent=0 // pred_check_branch
    %34 = sbr.rel (0) target = $region41
  $region40: #{resgcn_predict.1} parent=0 // pred_region
    _
  $region41: #{resgcn_predict.1} parent=0 // pred_fallthru
    _
  %v36 = vld [vmem:[%s2] sm:$0xff]
  %v37 = vld [vmem:[%s2 + $0x8] sm:$0xff]
  %v38 = vld [vmem:[%s3] sm:$0xf]
  %v39 = vld [vmem:[%s3 + $0x4] sm:$0xf]
  %v40 = vpack.c.bf16 %v37, %v36
  %v41 = vld [vmem:[%s4] sm:$0xf]
  %v42 = vld [vmem:[%s4 + $0x4] sm:$0xf]
  %v43 = vld [vmem:[%s4 + $0x8] sm:$0xf]
  %v44 = vld [vmem:[%s4 + $0xc] sm:$0xf]
  %v49 = vunpack.c.l.b16 %v41
  %v50 = vunpack.c.l.b16 %v42
  %v51 = vunpack.c.l.b16 %v43
  %v52 = vunpack.c.l.b16 %v44
  %v53 = vpack.c.b16 %v50, %v49
  %v54 = vpack.c.b16 %v52, %v51
  %vm57 = vcmask 261120
  %v59 = vsel %vm57, %v40, 0
  %61 = vmatprep.subr.bf16.mxu0 0
  %62 = vmatpush1.bf16.msra.mxu0 %v53
  %63 = vmatprep.subr.bf16.mxu0 0
  %64 = vmatpush1.bf16.msra.mxu0 %v54
  %65 = vmatprep.subr.bf16.mxu0 0
  %66 = vmatpush1.bf16.msra.mxu0 0
  %67 = vmatprep.subr.bf16.mxu0 0
  %68 = vmatpush1.bf16.msra.mxu0 0
  %69 = vmatprep.subr.bf16.mxu0 0
  %70 = vmatpush1.bf16.msra.mxu0 0
  %71 = vmatprep.subr.bf16.mxu0 0
  %72 = vmatpush1.bf16.msra.mxu0 0
  %73 = vmatprep.subr.bf16.mxu0 0
  %74 = vmatpush1.bf16.msra.mxu0 0
  %75 = vmatprep.subr.bf16.mxu0 0
  %76 = vmatpush1.bf16.msra.mxu0 0
  %77 = vmatprep.subr.bf16.mxu0 0
  %78 = vmatpush1.bf16.msra.mxu0 0
  %79 = vmatprep.subr.bf16.mxu0 0
  %80 = vmatpush1.bf16.msra.mxu0 0
  %81 = vmatprep.subr.bf16.mxu0 0
  %82 = vmatpush1.bf16.msra.mxu0 0
  %83 = vmatprep.subr.bf16.mxu0 0
  %84 = vmatpush1.bf16.msra.mxu0 0
  %85 = vmatprep.subr.bf16.mxu0 0
  %86 = vmatpush1.bf16.msra.mxu0 0
  %87 = vmatprep.subr.bf16.mxu0 0
  %88 = vmatpush1.bf16.msra.mxu0 0
  %89 = vmatprep.subr.bf16.mxu0 0
  %90 = vmatpush1.bf16.msra.mxu0 0
  %91 = vmatprep.subr.bf16.mxu0 0
  %92 = vmatpush1.bf16.msra.mxu0 0
  %93 = vmatprep.mubr.bf16.mxu0 0
  %94 = vmatmul.mubr.bf16.gmra.mrb[0].mxu0 %v59
  %v95 = vpop.f32.mrb[0].mxu0
  %v96 = vadd.f32 0.0, %v95
  %v97 = vpop.f32.mrb[0].mxu0
  %v98 = vpop.f32.mrb[0].mxu0
  %v99 = vadd.f32 0.0, %v98
  %v100 = vpop.f32.mrb[0].mxu0
  %101 = vdwg.mxu0
  %v102 = vpack.c.bf16 %v99, %v96
  %v103 = vld [vmem:[%s5] sm:$0x1]
  %v105 = vlaneseq
  %v106 = vshrl.u32 %v105, 7
  %v107 = vsub.s32 0, %v106
  %v108 = vrot.slane %v103, %v107
  %v112 = vunpack.c.l.b16 %v38
  %v113 = vunpack.c.l.b16 %v39
  %v114 = vpack.c.b16 %v113, %v112
  %vm115 = vcmask 130048
  %v117 = vsel %vm115, %v114, 0
  %119 = vmatprep.subr.bf16.mxu0 0
  %120 = vmatpush1.bf16.msra.mxu0 %v102
  %121 = vmatprep.subr.bf16.mxu0 0
  %122 = vmatpush1.bf16.msra.mxu0 0
  %123 = vmatprep.subr.bf16.mxu0 0
  %124 = vmatpush1.bf16.msra.mxu0 0
  %125 = vmatprep.subr.bf16.mxu0 0
  %126 = vmatpush1.bf16.msra.mxu0 0
  %127 = vmatprep.subr.bf16.mxu0 0
  %128 = vmatpush1.bf16.msra.mxu0 0
  %129 = vmatprep.subr.bf16.mxu0 0
  %130 = vmatpush1.bf16.msra.mxu0 0
  %131 = vmatprep.subr.bf16.mxu0 0
  %132 = vmatpush1.bf16.msra.mxu0 0
  %133 = vmatprep.subr.bf16.mxu0 0
  %134 = vmatpush1.bf16.msra.mxu0 0
  %135 = vmatprep.subr.bf16.mxu0 0
  %136 = vmatpush1.bf16.msra.mxu0 0
  %137 = vmatprep.subr.bf16.mxu0 0
  %138 = vmatpush1.bf16.msra.mxu0 0
  %139 = vmatprep.subr.bf16.mxu0 0
  %140 = vmatpush1.bf16.msra.mxu0 0
  %141 = vmatprep.subr.bf16.mxu0 0
  %142 = vmatpush1.bf16.msra.mxu0 0
  %143 = vmatprep.subr.bf16.mxu0 0
  %144 = vmatpush1.bf16.msra.mxu0 0
  %145 = vmatprep.subr.bf16.mxu0 0
  %146 = vmatpush1.bf16.msra.mxu0 0
  %147 = vmatprep.subr.bf16.mxu0 0
  %148 = vmatpush1.bf16.msra.mxu0 0
  %149 = vmatprep.subr.bf16.mxu0 0
  %150 = vmatpush1.bf16.msra.mxu0 0
  %151 = vmatprep.mubr.bf16.mxu0 0
  %152 = vmatmul.mubr.bf16.gmra.mrb[0].mxu0 %v117
  %v153 = vpop.f32.mrb[0].mxu0
  %v154 = vadd.f32 %v108, %v153
  %v155 = vpop.f32.mrb[0].mxu0
  %v156 = vpop.f32.mrb[0].mxu0
  %v157 = vadd.f32 %v108, %v156
  %v158 = vpop.f32.mrb[0].mxu0
  %159 = vdwg.mxu0
  %v160 = vmax.f32 %v154, 0.0
  %v161 = vmax.f32 %v157, 0.0
  %v162 = vmul.f32 %v160, %v160
  %v163 = vmul.f32 %v161, %v161
  %v164 = vsel %vm57, %v162, 0.0
  %165 = vadd.xlane.f32.xlu0 %v164
  %v166 = vpop.xlane.xlu0 %165
  %v167 = vsel %vm57, %v163, 0.0
  %168 = vadd.xlane.f32.xlu0 %v167
  %v169 = vpop.xlane.xlu0 %168
  %v170 = vadd.f32 %v166, 1e-24
  %v171 = vadd.f32 %v169, 1e-24
  %v172 = vrsqrt.pop %v170
  %v173 = vrsqrt.pop %v171
  %v174 = vmul.f32 %v160, %v172
  %v175 = vmul.f32 %v161, %v173
  %v176 = vadd.f32 %v174, %v36
  %v177 = vadd.f32 %v175, %v37
  %v178 = vmul.f32 %v176, 0.5
  %v179 = vmul.f32 %v177, 0.5
  %v180 = vpack.c.bf16 %v179, %v178
  %v181 = vld [vmem:[%s6] sm:$0xf]
  %v182 = vld [vmem:[%s6 + $0x4] sm:$0xf]
  %v183 = vld [vmem:[%s6 + $0x8] sm:$0xf]
  %v184 = vld [vmem:[%s6 + $0xc] sm:$0xf]
  %v189 = vunpack.c.l.b16 %v181
  %v190 = vunpack.c.l.b16 %v182
  %v191 = vunpack.c.l.b16 %v183
  %v192 = vunpack.c.l.b16 %v184
  %v193 = vpack.c.b16 %v190, %v189
  %v194 = vpack.c.b16 %v192, %v191
  %v198 = vsel %vm57, %v180, 0
  %200 = vmatprep.subr.bf16.mxu0 0
  %201 = vmatpush1.bf16.msra.mxu0 %v193
  %202 = vmatprep.subr.bf16.mxu0 0
  %203 = vmatpush1.bf16.msra.mxu0 %v194
  %204 = vmatprep.subr.bf16.mxu0 0
  %205 = vmatpush1.bf16.msra.mxu0 0
  %206 = vmatprep.subr.bf16.mxu0 0
  %207 = vmatpush1.bf16.msra.mxu0 0
  %208 = vmatprep.subr.bf16.mxu0 0
  %209 = vmatpush1.bf16.msra.mxu0 0
  %210 = vmatprep.subr.bf16.mxu0 0
  %211 = vmatpush1.bf16.msra.mxu0 0
  %212 = vmatprep.subr.bf16.mxu0 0
  %213 = vmatpush1.bf16.msra.mxu0 0
  %214 = vmatprep.subr.bf16.mxu0 0
  %215 = vmatpush1.bf16.msra.mxu0 0
  %216 = vmatprep.subr.bf16.mxu0 0
  %217 = vmatpush1.bf16.msra.mxu0 0
  %218 = vmatprep.subr.bf16.mxu0 0
  %219 = vmatpush1.bf16.msra.mxu0 0
  %220 = vmatprep.subr.bf16.mxu0 0
  %221 = vmatpush1.bf16.msra.mxu0 0
  %222 = vmatprep.subr.bf16.mxu0 0
  %223 = vmatpush1.bf16.msra.mxu0 0
  %224 = vmatprep.subr.bf16.mxu0 0
  %225 = vmatpush1.bf16.msra.mxu0 0
  %226 = vmatprep.subr.bf16.mxu0 0
  %227 = vmatpush1.bf16.msra.mxu0 0
  %228 = vmatprep.subr.bf16.mxu0 0
  %229 = vmatpush1.bf16.msra.mxu0 0
  %230 = vmatprep.subr.bf16.mxu0 0
  %231 = vmatpush1.bf16.msra.mxu0 0
  %232 = vmatprep.mubr.bf16.mxu0 0
  %233 = vmatmul.mubr.bf16.gmra.mrb[0].mxu0 %v198
  %v234 = vpop.f32.mrb[0].mxu0
  %v235 = vadd.f32 0.0, %v234
  %v236 = vpop.f32.mrb[0].mxu0
  %v237 = vpop.f32.mrb[0].mxu0
  %v238 = vadd.f32 0.0, %v237
  %v239 = vpop.f32.mrb[0].mxu0
  %240 = vdwg.mxu0
  %v241 = vpack.c.bf16 %v238, %v235
  %v242 = vld [vmem:[%s7] sm:$0x1]
  %v244 = vlaneseq
  %v245 = vshrl.u32 %v244, 7
  %v246 = vsub.s32 0, %v245
  %v247 = vrot.slane %v242, %v246
  %249 = vmatprep.subr.bf16.mxu0 0
  %250 = vmatpush1.bf16.msra.mxu0 %v241
  %251 = vmatprep.subr.bf16.mxu0 0
  %252 = vmatpush1.bf16.msra.mxu0 0
  %253 = vmatprep.subr.bf16.mxu0 0
  %254 = vmatpush1.bf16.msra.mxu0 0
  %255 = vmatprep.subr.bf16.mxu0 0
  %256 = vmatpush1.bf16.msra.mxu0 0
  %257 = vmatprep.subr.bf16.mxu0 0
  %258 = vmatpush1.bf16.msra.mxu0 0
  %259 = vmatprep.subr.bf16.mxu0 0
  %260 = vmatpush1.bf16.msra.mxu0 0
  %261 = vmatprep.subr.bf16.mxu0 0
  %262 = vmatpush1.bf16.msra.mxu0 0
  %263 = vmatprep.subr.bf16.mxu0 0
  %264 = vmatpush1.bf16.msra.mxu0 0
  %265 = vmatprep.subr.bf16.mxu0 0
  %266 = vmatpush1.bf16.msra.mxu0 0
  %267 = vmatprep.subr.bf16.mxu0 0
  %268 = vmatpush1.bf16.msra.mxu0 0
  %269 = vmatprep.subr.bf16.mxu0 0
  %270 = vmatpush1.bf16.msra.mxu0 0
  %271 = vmatprep.subr.bf16.mxu0 0
  %272 = vmatpush1.bf16.msra.mxu0 0
  %273 = vmatprep.subr.bf16.mxu0 0
  %274 = vmatpush1.bf16.msra.mxu0 0
  %275 = vmatprep.subr.bf16.mxu0 0
  %276 = vmatpush1.bf16.msra.mxu0 0
  %277 = vmatprep.subr.bf16.mxu0 0
  %278 = vmatpush1.bf16.msra.mxu0 0
  %279 = vmatprep.subr.bf16.mxu0 0
  %280 = vmatpush1.bf16.msra.mxu0 0
  %281 = vmatprep.mubr.bf16.mxu0 0
  %282 = vmatmul.mubr.bf16.gmra.mrb[0].mxu0 %v117
  %v283 = vpop.f32.mrb[0].mxu0
  %v284 = vadd.f32 %v247, %v283
  %v285 = vpop.f32.mrb[0].mxu0
  %v286 = vpop.f32.mrb[0].mxu0
  %v287 = vadd.f32 %v247, %v286
  %v288 = vpop.f32.mrb[0].mxu0
  %289 = vdwg.mxu0
  %v290 = vmax.f32 %v284, 0.0
  %v291 = vmax.f32 %v287, 0.0
  %v292 = vmul.f32 %v290, %v290
  %v293 = vmul.f32 %v291, %v291
  %v294 = vsel %vm57, %v292, 0.0
  %295 = vadd.xlane.f32.xlu0 %v294
  %v296 = vpop.xlane.xlu0 %295
  %v297 = vsel %vm57, %v293, 0.0
  %298 = vadd.xlane.f32.xlu0 %v297
  %v299 = vpop.xlane.xlu0 %298
  %v300 = vadd.f32 %v296, 1e-24
  %v301 = vadd.f32 %v299, 1e-24
  %v302 = vrsqrt.pop %v300
  %v303 = vrsqrt.pop %v301
  %v304 = vmul.f32 %v290, %v302
  %v305 = vmul.f32 %v291, %v303
  %v306 = vadd.f32 %v304, %v178
  %v307 = vadd.f32 %v305, %v179
  %v308 = vmul.f32 %v306, 0.5
  %v309 = vmul.f32 %v307, 0.5
  %v310 = vpack.c.bf16 %v309, %v308
  %v311 = vld [vmem:[%s8] sm:$0xf]
  %v312 = vld [vmem:[%s8 + $0x4] sm:$0xf]
  %v313 = vld [vmem:[%s8 + $0x8] sm:$0xf]
  %v314 = vld [vmem:[%s8 + $0xc] sm:$0xf]
  %v319 = vunpack.c.l.b16 %v311
  %v320 = vunpack.c.l.b16 %v312
  %v321 = vunpack.c.l.b16 %v313
  %v322 = vunpack.c.l.b16 %v314
  %v323 = vpack.c.b16 %v320, %v319
  %v324 = vpack.c.b16 %v322, %v321
  %v328 = vsel %vm57, %v310, 0
  %330 = vmatprep.subr.bf16.mxu0 0
  %331 = vmatpush1.bf16.msra.mxu0 %v323
  %332 = vmatprep.subr.bf16.mxu0 0
  %333 = vmatpush1.bf16.msra.mxu0 %v324
  %334 = vmatprep.subr.bf16.mxu0 0
  %335 = vmatpush1.bf16.msra.mxu0 0
  %336 = vmatprep.subr.bf16.mxu0 0
  %337 = vmatpush1.bf16.msra.mxu0 0
  %338 = vmatprep.subr.bf16.mxu0 0
  %339 = vmatpush1.bf16.msra.mxu0 0
  %340 = vmatprep.subr.bf16.mxu0 0
  %341 = vmatpush1.bf16.msra.mxu0 0
  %342 = vmatprep.subr.bf16.mxu0 0
  %343 = vmatpush1.bf16.msra.mxu0 0
  %344 = vmatprep.subr.bf16.mxu0 0
  %345 = vmatpush1.bf16.msra.mxu0 0
  %346 = vmatprep.subr.bf16.mxu0 0
  %347 = vmatpush1.bf16.msra.mxu0 0
  %348 = vmatprep.subr.bf16.mxu0 0
  %349 = vmatpush1.bf16.msra.mxu0 0
  %350 = vmatprep.subr.bf16.mxu0 0
  %351 = vmatpush1.bf16.msra.mxu0 0
  %352 = vmatprep.subr.bf16.mxu0 0
  %353 = vmatpush1.bf16.msra.mxu0 0
  %354 = vmatprep.subr.bf16.mxu0 0
  %355 = vmatpush1.bf16.msra.mxu0 0
  %356 = vmatprep.subr.bf16.mxu0 0
  %357 = vmatpush1.bf16.msra.mxu0 0
  %358 = vmatprep.subr.bf16.mxu0 0
  %359 = vmatpush1.bf16.msra.mxu0 0
  %360 = vmatprep.subr.bf16.mxu0 0
  %361 = vmatpush1.bf16.msra.mxu0 0
  %362 = vmatprep.mubr.bf16.mxu0 0
  %363 = vmatmul.mubr.bf16.gmra.mrb[0].mxu0 %v328
  %v364 = vpop.f32.mrb[0].mxu0
  %v365 = vadd.f32 0.0, %v364
  %v366 = vpop.f32.mrb[0].mxu0
  %v367 = vpop.f32.mrb[0].mxu0
  %v368 = vadd.f32 0.0, %v367
  %v369 = vpop.f32.mrb[0].mxu0
  %370 = vdwg.mxu0
  %v371 = vpack.c.bf16 %v368, %v365
  %v372 = vld [vmem:[%s9] sm:$0x1]
  %v374 = vlaneseq
  %v375 = vshrl.u32 %v374, 7
  %v376 = vsub.s32 0, %v375
  %v377 = vrot.slane %v372, %v376
  %379 = vmatprep.subr.bf16.mxu0 0
  %380 = vmatpush1.bf16.msra.mxu0 %v371
  %381 = vmatprep.subr.bf16.mxu0 0
  %382 = vmatpush1.bf16.msra.mxu0 0
  %383 = vmatprep.subr.bf16.mxu0 0
  %384 = vmatpush1.bf16.msra.mxu0 0
  %385 = vmatprep.subr.bf16.mxu0 0
  %386 = vmatpush1.bf16.msra.mxu0 0
  %387 = vmatprep.subr.bf16.mxu0 0
  %388 = vmatpush1.bf16.msra.mxu0 0
  %389 = vmatprep.subr.bf16.mxu0 0
  %390 = vmatpush1.bf16.msra.mxu0 0
  %391 = vmatprep.subr.bf16.mxu0 0
  %392 = vmatpush1.bf16.msra.mxu0 0
  %393 = vmatprep.subr.bf16.mxu0 0
  %394 = vmatpush1.bf16.msra.mxu0 0
  %395 = vmatprep.subr.bf16.mxu0 0
  %396 = vmatpush1.bf16.msra.mxu0 0
  %397 = vmatprep.subr.bf16.mxu0 0
  %398 = vmatpush1.bf16.msra.mxu0 0
  %399 = vmatprep.subr.bf16.mxu0 0
  %400 = vmatpush1.bf16.msra.mxu0 0
  %401 = vmatprep.subr.bf16.mxu0 0
  %402 = vmatpush1.bf16.msra.mxu0 0
  %403 = vmatprep.subr.bf16.mxu0 0
  %404 = vmatpush1.bf16.msra.mxu0 0
  %405 = vmatprep.subr.bf16.mxu0 0
  %406 = vmatpush1.bf16.msra.mxu0 0
  %407 = vmatprep.subr.bf16.mxu0 0
  %408 = vmatpush1.bf16.msra.mxu0 0
  %409 = vmatprep.subr.bf16.mxu0 0
  %410 = vmatpush1.bf16.msra.mxu0 0
  %411 = vmatprep.mubr.bf16.mxu0 0
  %412 = vmatmul.mubr.bf16.gmra.mrb[0].mxu0 %v117
  %v413 = vpop.f32.mrb[0].mxu0
  %v414 = vadd.f32 %v377, %v413
  %v415 = vpop.f32.mrb[0].mxu0
  %v416 = vpop.f32.mrb[0].mxu0
  %v417 = vadd.f32 %v377, %v416
  %v418 = vpop.f32.mrb[0].mxu0
  %419 = vdwg.mxu0
  %vm420 = vcmask 15360
  %v421 = vsel %vm420, %v414, -inf
  %422 = vmax.xlane.f32.xlu0 %v421
  %v423 = vpop.xlane.xlu0 %422
  %v424 = vsel %vm420, %v417, -inf
  %425 = vmax.xlane.f32.xlu0 %v424
  %v426 = vpop.xlane.xlu0 %425
  %v427 = vsub.f32 %v414, %v423
  %v428 = vsub.f32 %v417, %v426
  %v429 = vmul.f32 %v427, 1.442695
  %v430 = vpow.pop %v429
  %v431 = vmul.f32 %v428, 1.442695
  %v432 = vpow.pop %v431
  %v433 = vsel %vm420, %v430, 0.0
  %434 = vadd.xlane.f32.xlu0 %v433
  %v435 = vpop.xlane.xlu0 %434
  %v436 = vsel %vm420, %v432, 0.0
  %437 = vadd.xlane.f32.xlu0 %v436
  %v438 = vpop.xlane.xlu0 %437
  %v439 = vlog2.pop %v435
  %v440 = vmul.f32 %v439, 0.6931472
  %v441 = vlog2.pop %v438
  %v442 = vmul.f32 %v441, 0.6931472
  %v443 = vsub.f32 %v427, %v440
  %v444 = vsub.f32 %v428, %v442
  %v445 = vlaneseq
  %v446 = vand.u32 %v445, 127
  %v447 = vld [vmem:[%s0] sm:$0xff]
  %v448 = vld [vmem:[%s0 + $0x8] sm:$0xff]
  %v449 = vld [vmem:[%s0 + $0x10] sm:$0xff]
  %450 = vset.pattern.permute.xlu0 0
  %451 = vperm.xlu0 %450, %v447
  %v452 = vpop.permute.xlu0 %451
  %453 = vset.pattern.permute.xlu0 0
  %454 = vperm.xlu0 %453, %v448
  %v455 = vpop.permute.xlu0 %454
  %456 = vset.pattern.permute.xlu0 0
  %457 = vperm.xlu0 %456, %v449
  %v458 = vpop.permute.xlu0 %457
  %vm459 = vcmp.eq.s32.totalorder %v446, %v452
  %vm460 = vcmp.eq.s32.totalorder %v446, %v455
  %vm461 = vcmp.eq.s32.totalorder %v446, %v458
  %v462 = vsel %vm459, 1, 0
  %v463 = vsel %vm460, 1, 0
  %v464 = vsel %vm461, 1, 0
  %v465 = vcvt.s32.f32 %v462
  %v466 = vcvt.s32.f32 %v463
  %v467 = vcvt.s32.f32 %v464
  %v468 = vld [vmem:[%s1] sm:$0xff]
  %v469 = vld [vmem:[%s1 + $0x8] sm:$0xff]
  %v470 = vld [vmem:[%s1 + $0x10] sm:$0xff]
  %471 = vset.pattern.permute.xlu0 0
  %472 = vperm.xlu0 %471, %v468
  %v473 = vpop.permute.xlu0 %472
  %474 = vset.pattern.permute.xlu0 0
  %475 = vperm.xlu0 %474, %v469
  %v476 = vpop.permute.xlu0 %475
  %477 = vset.pattern.permute.xlu0 0
  %478 = vperm.xlu0 %477, %v470
  %v479 = vpop.permute.xlu0 %478
  %vm480 = vcmp.eq.s32.totalorder %v446, %v473
  %vm481 = vcmp.eq.s32.totalorder %v446, %v476
  %vm482 = vcmp.eq.s32.totalorder %v446, %v479
  %v483 = vsel %vm480, 1, 0
  %v484 = vsel %vm481, 1, 0
  %v485 = vsel %vm482, 1, 0
  %v486 = vcvt.s32.f32 %v483
  %v487 = vcvt.s32.f32 %v484
  %v488 = vcvt.s32.f32 %v485
  %v490 = vsel %vm115, %v465, 0
  %v493 = vsel %vm115, %v466, 0
  %v496 = vsel %vm115, %v467, 0
  %498 = vmatprep.subr.mxu0 0.0
  %499 = vmatpush1.msra.mxu0 %v443
  %500 = vmatprep.subr.mxu0 0.0
  %501 = vmatpush1.msra.mxu0 %v444
  %502 = vmatprep.subr.mxu0 0.0
  %503 = vmatpush1.msra.mxu0 0.0
  %504 = vmatprep.subr.mxu0 0.0
  %505 = vmatpush1.msra.mxu0 0.0
  %506 = vmatprep.subr.mxu0 0.0
  %507 = vmatpush1.msra.mxu0 0.0
  %508 = vmatprep.subr.mxu0 0.0
  %509 = vmatpush1.msra.mxu0 0.0
  %510 = vmatprep.subr.mxu0 0.0
  %511 = vmatpush1.msra.mxu0 0.0
  %512 = vmatprep.subr.mxu0 0.0
  %513 = vmatpush1.msra.mxu0 0.0
  %514 = vmatprep.subr.mxu0 0.0
  %515 = vmatpush1.msra.mxu0 0.0
  %516 = vmatprep.subr.mxu0 0.0
  %517 = vmatpush1.msra.mxu0 0.0
  %518 = vmatprep.subr.mxu0 0.0
  %519 = vmatpush1.msra.mxu0 0.0
  %520 = vmatprep.subr.mxu0 0.0
  %521 = vmatpush1.msra.mxu0 0.0
  %522 = vmatprep.subr.mxu0 0.0
  %523 = vmatpush1.msra.mxu0 0.0
  %524 = vmatprep.subr.mxu0 0.0
  %525 = vmatpush1.msra.mxu0 0.0
  %526 = vmatprep.subr.mxu0 0.0
  %527 = vmatpush1.msra.mxu0 0.0
  %528 = vmatprep.subr.mxu0 0.0
  %529 = vmatpush1.msra.mxu0 0.0
  %530 = vmatprep.subr.mxu0 0.0
  %531 = vmatpush1.msra.mxu0 0.0
  %532 = vmatprep.subr.mxu0 0.0
  %533 = vmatpush1.msra.mxu0 0.0
  %534 = vmatprep.subr.mxu0 0.0
  %535 = vmatpush1.msra.mxu0 0.0
  %536 = vmatprep.subr.mxu0 0.0
  %537 = vmatpush1.msra.mxu0 0.0
  %538 = vmatprep.subr.mxu0 0.0
  %539 = vmatpush1.msra.mxu0 0.0
  %540 = vmatprep.subr.mxu0 0.0
  %541 = vmatpush1.msra.mxu0 0.0
  %542 = vmatprep.subr.mxu0 0.0
  %543 = vmatpush1.msra.mxu0 0.0
  %544 = vmatprep.subr.mxu0 0.0
  %545 = vmatpush1.msra.mxu0 0.0
  %546 = vmatprep.subr.mxu0 0.0
  %547 = vmatpush1.msra.mxu0 0.0
  %548 = vmatprep.subr.mxu0 0.0
  %549 = vmatpush1.msra.mxu0 0.0
  %550 = vmatprep.subr.mxu0 0.0
  %551 = vmatpush1.msra.mxu0 0.0
  %552 = vmatprep.subr.mxu0 0.0
  %553 = vmatpush1.msra.mxu0 0.0
  %554 = vmatprep.subr.mxu0 0.0
  %555 = vmatpush1.msra.mxu0 0.0
  %556 = vmatprep.subr.mxu0 0.0
  %557 = vmatpush1.msra.mxu0 0.0
  %558 = vmatprep.subr.mxu0 0.0
  %559 = vmatpush1.msra.mxu0 0.0
  %560 = vmatprep.subr.mxu0 0.0
  %561 = vmatpush1.msra.mxu0 0.0
  %562 = vmatprep.mubr.f32.mxu0 0.0
  %563 = vmatmul.mubr.f32.gmra.mrb[0].mxu0 %v490
  %v564 = vpop.f32.mrb[0].mxu0
  %v565 = vadd.f32 0.0, %v564
  %v566 = vpop.f32.mrb[0].mxu0
  %567 = vmatprep.mubr.f32.mxu0 0.0
  %568 = vmatmul.mubr.f32.gmra.mrb[0].mxu0 %v493
  %v569 = vpop.f32.mrb[0].mxu0
  %v570 = vadd.f32 0.0, %v569
  %v571 = vpop.f32.mrb[0].mxu0
  %572 = vmatprep.mubr.f32.mxu0 0.0
  %573 = vmatmul.mubr.f32.gmra.mrb[0].mxu0 %v496
  %v574 = vpop.f32.mrb[0].mxu0
  %v575 = vadd.f32 0.0, %v574
  %v576 = vpop.f32.mrb[0].mxu0
  %577 = vdwg.mxu0
  %v579 = vsel %vm115, %v486, 0
  %v582 = vsel %vm115, %v487, 0
  %v585 = vsel %vm115, %v488, 0
  %587 = vmatprep.subr.mxu0 0.0
  %588 = vmatpush1.msra.mxu0 %v443
  %589 = vmatprep.subr.mxu0 0.0
  %590 = vmatpush1.msra.mxu0 %v444
  %591 = vmatprep.subr.mxu0 0.0
  %592 = vmatpush1.msra.mxu0 0.0
  %593 = vmatprep.subr.mxu0 0.0
  %594 = vmatpush1.msra.mxu0 0.0
  %595 = vmatprep.subr.mxu0 0.0
  %596 = vmatpush1.msra.mxu0 0.0
  %597 = vmatprep.subr.mxu0 0.0
  %598 = vmatpush1.msra.mxu0 0.0
  %599 = vmatprep.subr.mxu0 0.0
  %600 = vmatpush1.msra.mxu0 0.0
  %601 = vmatprep.subr.mxu0 0.0
  %602 = vmatpush1.msra.mxu0 0.0
  %603 = vmatprep.subr.mxu0 0.0
  %604 = vmatpush1.msra.mxu0 0.0
  %605 = vmatprep.subr.mxu0 0.0
  %606 = vmatpush1.msra.mxu0 0.0
  %607 = vmatprep.subr.mxu0 0.0
  %608 = vmatpush1.msra.mxu0 0.0
  %609 = vmatprep.subr.mxu0 0.0
  %610 = vmatpush1.msra.mxu0 0.0
  %611 = vmatprep.subr.mxu0 0.0
  %612 = vmatpush1.msra.mxu0 0.0
  %613 = vmatprep.subr.mxu0 0.0
  %614 = vmatpush1.msra.mxu0 0.0
  %615 = vmatprep.subr.mxu0 0.0
  %616 = vmatpush1.msra.mxu0 0.0
  %617 = vmatprep.subr.mxu0 0.0
  %618 = vmatpush1.msra.mxu0 0.0
  %619 = vmatprep.subr.mxu0 0.0
  %620 = vmatpush1.msra.mxu0 0.0
  %621 = vmatprep.subr.mxu0 0.0
  %622 = vmatpush1.msra.mxu0 0.0
  %623 = vmatprep.subr.mxu0 0.0
  %624 = vmatpush1.msra.mxu0 0.0
  %625 = vmatprep.subr.mxu0 0.0
  %626 = vmatpush1.msra.mxu0 0.0
  %627 = vmatprep.subr.mxu0 0.0
  %628 = vmatpush1.msra.mxu0 0.0
  %629 = vmatprep.subr.mxu0 0.0
  %630 = vmatpush1.msra.mxu0 0.0
  %631 = vmatprep.subr.mxu0 0.0
  %632 = vmatpush1.msra.mxu0 0.0
  %633 = vmatprep.subr.mxu0 0.0
  %634 = vmatpush1.msra.mxu0 0.0
  %635 = vmatprep.subr.mxu0 0.0
  %636 = vmatpush1.msra.mxu0 0.0
  %637 = vmatprep.subr.mxu0 0.0
  %638 = vmatpush1.msra.mxu0 0.0
  %639 = vmatprep.subr.mxu0 0.0
  %640 = vmatpush1.msra.mxu0 0.0
  %641 = vmatprep.subr.mxu0 0.0
  %642 = vmatpush1.msra.mxu0 0.0
  %643 = vmatprep.subr.mxu0 0.0
  %644 = vmatpush1.msra.mxu0 0.0
  %645 = vmatprep.subr.mxu0 0.0
  %646 = vmatpush1.msra.mxu0 0.0
  %647 = vmatprep.subr.mxu0 0.0
  %648 = vmatpush1.msra.mxu0 0.0
  %649 = vmatprep.subr.mxu0 0.0
  %650 = vmatpush1.msra.mxu0 0.0
  %651 = vmatprep.mubr.f32.mxu0 0.0
  %652 = vmatmul.mubr.f32.gmra.mrb[0].mxu0 %v579
  %v653 = vpop.f32.mrb[0].mxu0
  %v654 = vadd.f32 0.0, %v653
  %v655 = vpop.f32.mrb[0].mxu0
  %656 = vmatprep.mubr.f32.mxu0 0.0
  %657 = vmatmul.mubr.f32.gmra.mrb[0].mxu0 %v582
  %v658 = vpop.f32.mrb[0].mxu0
  %v659 = vadd.f32 0.0, %v658
  %v660 = vpop.f32.mrb[0].mxu0
  %661 = vmatprep.mubr.f32.mxu0 0.0
  %662 = vmatmul.mubr.f32.gmra.mrb[0].mxu0 %v585
  %v663 = vpop.f32.mrb[0].mxu0
  %v664 = vadd.f32 0.0, %v663
  %v665 = vpop.f32.mrb[0].mxu0
  %666 = vdwg.mxu0
  %v667 = vmul.f32 %v565, %v654
  %v668 = vmul.f32 %v570, %v659
  %v669 = vmul.f32 %v575, %v664
  %v670 = vsub.f32 0.0, %v667
  %v671 = vsub.f32 0.0, %v668
  %v672 = vsub.f32 0.0, %v669
  %673 = vst.msk [vmem:[%s10] sm:$0xff] %vm420, %v670
  %674 = vst.msk [vmem:[%s10 + $0x8] sm:$0xff] %vm420, %v671
  %675 = vst.msk [vmem:[%s10 + $0x10] sm:$0xff] %vm420, %v672
  // Predicated region
  $region42: #{resgcn_predict.1} parent=0 // pred_check
    _
  $region43: #{resgcn_predict.1} parent=0 // pred_check_branch
    %677 = sbr.rel (0) target = $region45
  $region44: #{resgcn_predict.1} parent=0 // pred_region
    _
  $region45: #{resgcn_predict.1} parent=0 // pred_fallthru
    _
  // Predicated region
  $region46: #{resgcn_predict.1} parent=0 // pred_check
    _
  $region47: #{resgcn_predict.1} parent=0 // pred_check_branch
    %679 = sbr.rel (0) target = $region49
  $region48: #{resgcn_predict.1} parent=0 // pred_region
    _
  $region49: #{resgcn_predict.1} parent=0 // pred_fallthru
    _

</llo_original>
